<compile_context>
chip_gen: v5e
topology: v5e:2x2
jax: 0.10.0
libtpu: 0.0.40
codegen_flags: <defaults>
</compile_context>

<pallas_src>
import math
import functools

import numpy as np
import jax
import jax.numpy as jnp
from jax import lax
from jax.experimental import pallas as pl
from jax.experimental.pallas import tpu as pltpu

# ----------------------------- configuration --------------------------------
INPUT_DIMS = (4, 8, 4)        # per-variable input feature dims
HIDDEN_DIM = 32
NUM_VARS = len(INPUT_DIMS)
D_TOTAL = sum(INPUT_DIMS)
B, T = 2, 8                   # batch, time (small test shapes)
LN_EPS = 1e-5
MM_DTYPE = jnp.bfloat16       # matmul-operand dtype (accumulation is always f32)


def _round_up(x, m):
    return ((x + m - 1) // m) * m


def _gelu_exact(x):
    # exact GELU: 0.5 * x * (1 + erf(x / sqrt(2)))  (matches nn.GELU() default)
    # (tanh-approx GELU would move work to the EUP, but changes model numerics.)
    return 0.5 * x * (1.0 + lax.erf(x * (1.0 / math.sqrt(2.0))))


# ------------------------------- the kernel ----------------------------------
def _vsn_kernel(input_dims, hidden_dim, mm_dtype,
                x_ref, wv_ref, ww_ref, aux_ref, b_ref, o_ref):
    V = len(input_dims)
    H = hidden_dim
    D = sum(input_dims)
    VH = V * H
    D8 = _round_up(D, 8)
    VHp = _round_up(VH, 128)          # lane-aligned column offset of the skip panel
    EV = _round_up(V, 16)             # padded contraction dim for the tiny expand dot
    f32 = jnp.float32

    # ---- packed matmul weights (mm_dtype, e.g. bf16) -------------------------
    w1 = wv_ref[0:D, :]                        # (D, VHp+VH): [fc1_bd | 0 | skip_bd]
    fc2_w = wv_ref[D8:D8 + VH, 0:VH]           # (VH, VH) block-diag fc2
    w2 = ww_ref[0:VH, :]                       # (VH, VHp+V): [wfc1 | 0 | wskip]
    wfc2_w = ww_ref[VH:VH + H, 0:V]            # (H, V)
    pmat = aux_ref[0:VH, 0:VH]                 # (VH, VH) same-block indicator
    smat = aux_ref[VH:2 * VH, 0:H]             # (VH, H)  stacked identities
    emat = aux_ref[2 * VH:2 * VH + EV, 0:VH]   # (EV, VH) block expand (rows >= V = 0)

    # ---- bias / LayerNorm affine rows (f32) ----------------------------------
    b = b_ref[...]
    b1, b2, bs = b[0:1, :], b[1:2, :], b[2:3, :]
    gam, bet = b[3:4, :], b[4:5, :]
    wb1 = b[5:6, 0:H]
    wb2, wbs = b[6:7, 0:V], b[7:8, 0:V]
    wgam, wbet = b[8:9, 0:V], b[9:10, 0:V]

    def dot_hilo(a, w):
        # f32-accurate matmul against a constant 0/1 matrix: split the f32 lhs
        # into bf16 hi+lo parts (two MXU passes).  Used only where full precision
        # matters (LN statistics, weighted sum); the MXU is idle there anyway.
        if mm_dtype == jnp.float32:
            return jnp.dot(a, w, preferred_element_type=f32)
        hi = a.astype(mm_dtype)
        lo = (a - hi.astype(f32)).astype(mm_dtype)
        return (jnp.dot(hi, w, preferred_element_type=f32) +
                jnp.dot(lo, w, preferred_element_type=f32))

    x = x_ref[...].astype(mm_dtype)            # (tm, D); cast in-kernel (VPU)

    # ---- all V per-variable GRNs fused via block-diagonal weights ------------
    t1 = jnp.dot(x, w1, preferred_element_type=f32)          # (tm, VHp+VH)
    h = _gelu_exact(t1[:, 0:VH] + b1)
    res = t1[:, VHp:VHp + VH] + bs
    y = jnp.dot(h.astype(mm_dtype), fc2_w, preferred_element_type=f32) + b2
    z = y * jax.nn.sigmoid(y) + res            # GLU(cat[y,y]) + skip ; (tm, VH) f32

    # ---- per-variable LayerNorm; per-block statistics pooled on the MXU -------
    inv_h = 1.0 / H
    m = dot_hilo(z, pmat) * inv_h              # per-block mean, broadcast over block
    ex2 = dot_hilo(z * z, pmat) * inv_h        # per-block E[z^2]
    var = ex2 - m * m                          # biased variance (eps guards pad rows)
    flat = (z - m) * lax.rsqrt(var + LN_EPS) * gam + bet      # (tm, VH) f32
    # `flat` IS the concatenated variable embeddings == weight-GRN input.

    # ---- weight GRN -----------------------------------------------------------
    fb = flat.astype(mm_dtype)
    t2 = jnp.dot(fb, w2, preferred_element_type=f32)          # (tm, VHp+V)
    wh = _gelu_exact(t2[:, 0:H] + wb1)
    wres = t2[:, VHp:VHp + V] + wbs
    wy = jnp.dot(wh.astype(mm_dtype), wfc2_w, preferred_element_type=f32) + wb2
    wz = wy * jax.nn.sigmoid(wy) + wres                       # (tm, V)
    wm = jnp.mean(wz, axis=-1, keepdims=True)
    wvar = jnp.mean(wz * wz, axis=-1, keepdims=True) - wm * wm
    logits = (wz - wm) * lax.rsqrt(wvar + LN_EPS) * wgam + wbet

    # ---- softmax over variables (reciprocal on the EUP + 1 Newton step) -------
    logits = logits - jnp.max(logits, axis=-1, keepdims=True)
    e = jnp.exp(logits)
    s = jnp.sum(e, axis=-1, keepdims=True)
    r = pl.reciprocal(s, approx=True)
    r = r * (2.0 - s * r)                      # Newton refine -> ~f32 accuracy
    weights = e * r                            # (tm, V)

    # ---- weighted sum of variable embeddings, on the MXU ----------------------
    rows = weights.shape[0]
    wpad = weights
    if EV > V:
        wpad = jnp.concatenate(
            [weights, jnp.zeros((rows, EV - V), f32)], axis=-1)
    wexp = dot_hilo(wpad, emat)                # (tm, VH): weights replicated / block
    out = dot_hilo(flat * wexp, smat)          # (tm, H) : sum over the V blocks

    # ---- single lane-dense output slab: [out | weights | 0-pad] ---------------
    pad_w = o_ref.shape[1] - (H + V)
    pieces = [out, weights]
    if pad_w > 0:
        pieces.append(jnp.zeros((rows, pad_w), f32))
    o_ref[...] = jnp.concatenate(pieces, axis=-1)


# ----------------------------- parameter init --------------------------------
def _init_linear(key, in_dim, out_dim):
    k1, k2 = jax.random.split(key)
    bound = 1.0 / math.sqrt(in_dim)
    w = jax.random.uniform(k1, (in_dim, out_dim), jnp.float32, -bound, bound)
    b = jax.random.uniform(k2, (out_dim,), jnp.float32, -bound, bound)
    return w, b


def _init_grn(key, in_dim, hid_dim, out_dim):
    k1, k2, k3 = jax.random.split(key, 3)
    fc1_w, fc1_b = _init_linear(k1, in_dim, hid_dim)
    fc2_w, fc2_b = _init_linear(k2, hid_dim, out_dim)
    if in_dim != out_dim:
        skip_w, skip_b = _init_linear(k3, in_dim, out_dim)
    else:
        skip_w = jnp.eye(in_dim, dtype=jnp.float32)     # nn.Identity skip
        skip_b = jnp.zeros((out_dim,), jnp.float32)
    return dict(fc1_w=fc1_w, fc1_b=fc1_b, fc2_w=fc2_w, fc2_b=fc2_b,
                skip_w=skip_w, skip_b=skip_b,
                gamma=jnp.ones((out_dim,), jnp.float32),
                beta=jnp.zeros((out_dim,), jnp.float32))


def init_vsn_params(key, input_dims, hidden_dim):
    keys = jax.random.split(key, len(input_dims) + 1)
    var_grns = [_init_grn(keys[i], d, hidden_dim, hidden_dim)
                for i, d in enumerate(input_dims)]
    weight_grn = _init_grn(keys[len(input_dims)],
                           hidden_dim * len(input_dims), hidden_dim, len(input_dims))
    return var_grns, weight_grn


def pack_vsn_params(var_grns, weight_grn, input_dims, hidden_dim, mm_dtype=MM_DTYPE):
    """Pack all parameters into 4 arrays:
       wv   : variable-GRN slab  [fc1_bd | 0 | skip_bd] ; fc2_bd      (mm_dtype)
       ww   : weight-GRN slab    [wfc1 | 0 | wskip]     ; wfc2        (mm_dtype)
       aux  : constant 0/1 matrices P (LN pool), S (chunk sum), E (expand) (mm_dtype)
       brows: bias / LayerNorm gamma,beta rows                        (f32)
    """
    V, H, D = len(input_dims), hidden_dim, sum(input_dims)
    VH = V * H
    D8 = _round_up(D, 8)
    VHp = _round_up(VH, 128)
    EV = _round_up(V, 16)

    wv = np.zeros((D8 + VH, VHp + VH), np.float32)
    brows = np.zeros((16, VH), np.float32)
    off = 0
    for i, d in enumerate(input_dims):
        g = {k: np.asarray(v, np.float32) for k, v in var_grns[i].items()}
        c = i * H
        wv[off:off + d, c:c + H] = g["fc1_w"]
        wv[off:off + d, VHp + c:VHp + c + H] = g["skip_w"]
        wv[D8 + c:D8 + c + H, c:c + H] = g["fc2_w"]
        brows[0, c:c + H] = g["fc1_b"]
        brows[1, c:c + H] = g["fc2_b"]
        brows[2, c:c + H] = g["skip_b"]
        brows[3, c:c + H] = g["gamma"]
        brows[4, c:c + H] = g["beta"]
        off += d

    g = {k: np.asarray(v, np.float32) for k, v in weight_grn.items()}
    ww = np.zeros((VH + H, VHp + V), np.float32)
    ww[0:VH, 0:H] = g["fc1_w"]
    ww[0:VH, VHp:VHp + V] = g["skip_w"]
    ww[VH:VH + H, 0:V] = g["fc2_w"]
    brows[5, 0:H] = g["fc1_b"]
    brows[6, 0:V] = g["fc2_b"]
    brows[7, 0:V] = g["skip_b"]
    brows[8, 0:V] = g["gamma"]
    brows[9, 0:V] = g["beta"]

    aux = np.zeros((2 * VH + EV, VH), np.float32)
    for v in range(V):
        c = v * H
        aux[c:c + H, c:c + H] = 1.0                  # P: same-block indicator
        aux[VH + c:VH + c + H, 0:H] = np.eye(H)      # S: stacked identities
        aux[2 * VH + v, c:c + H] = 1.0               # E: block expand

    return (jnp.asarray(wv, mm_dtype), jnp.asarray(ww, mm_dtype),
            jnp.asarray(aux, mm_dtype), jnp.asarray(brows, jnp.float32))


# ----------------------------- pallas wrapper --------------------------------
def variable_selection_network(x, packed_params, input_dims=INPUT_DIMS,
                               hidden_dim=HIDDEN_DIM, tm=None):
    """x: (B, T, sum(input_dims)) -> (out (B,T,hidden), weights (B,T,num_vars))."""
    wv, ww, aux, brows = packed_params
    Bx, Tx, Dx = x.shape
    assert Dx == sum(input_dims)
    V, H = len(input_dims), hidden_dim
    N = Bx * Tx
    n8 = _round_up(N, 8)

    # Row-tile selection (perf review): tm=128 keeps all (tm, ~96..224) f32
    # intermediates inside the vreg file (tm=512 spilled); and the "parallel"
    # grid axis always gets >= 2 steps when possible so both v7x TCs get work.
    if tm is None:
        tm = 128
    tm = max(8, _round_up(min(tm, n8), 8))
    if tm >= n8 and n8 > 8:
        tm = _round_up(pl.cdiv(n8, 2), 8)
    n_pad = _round_up(n8, tm)

    out_w = _round_up(H + V, 64)       # lane-dense merged output width

    x2 = x.reshape(N, Dx)              # stays f32; the kernel casts on the VPU
    if n_pad != N:                     # padding only for ragged row counts
        x2 = jnp.pad(x2, ((0, n_pad - N), (0, 0)))

    mm_dtype = wv.dtype
    kernel = functools.partial(_vsn_kernel, tuple(input_dims), hidden_dim, mm_dtype)

    # Note: wv/ww/aux/brows have constant index maps; pl.Buffered(1) would avoid
    # their pointless double-buffer, but they total <150 KiB so it is left off
    # for maximum lowering compatibility.
    merged = pl.pallas_call(
        kernel,
        out_shape=jax.ShapeDtypeStruct((n_pad, out_w), jnp.float32),
        grid=(n_pad // tm,),
        in_specs=[pl.BlockSpec((tm, Dx), lambda i: (i, 0)),
                  pl.BlockSpec(wv.shape, lambda i: (0, 0)),
                  pl.BlockSpec(ww.shape, lambda i: (0, 0)),
                  pl.BlockSpec(aux.shape, lambda i: (0, 0)),
                  pl.BlockSpec(brows.shape, lambda i: (0, 0))],
        out_specs=pl.BlockSpec((tm, out_w), lambda i: (i, 0)),
        compiler_params=pltpu.CompilerParams(
            dimension_semantics=("parallel",)),
    )(x2, wv, ww, aux, brows)

    out = merged[:N, 0:H].reshape(Bx, Tx, H)
    weights = merged[:N, H:H + V].reshape(Bx, Tx, V)
    return out, weights


# ----------------------------- pure-JAX reference ----------------------------
def _dot_ref(a, b, mm_dtype):
    return jnp.dot(a.astype(mm_dtype), b.astype(mm_dtype),
                   preferred_element_type=jnp.float32)


def _grn_ref(x, g, mm_dtype):
    res = _dot_ref(x, g["skip_w"], mm_dtype) + g["skip_b"]
    h = _gelu_exact(_dot_ref(x, g["fc1_w"], mm_dtype) + g["fc1_b"])
    y = _dot_ref(h, g["fc2_w"], mm_dtype) + g["fc2_b"]
    z = y * jax.nn.sigmoid(y) + res
    m = jnp.mean(z, axis=-1, keepdims=True)
    var = jnp.mean((z - m) ** 2, axis=-1, keepdims=True)
    return (z - m) * lax.rsqrt(var + LN_EPS) * g["gamma"] + g["beta"]


def vsn_ref(x, var_grns, weight_grn, input_dims, mm_dtype):
    offs = np.cumsum([0] + list(input_dims))
    var_outs = [_grn_ref(x[..., int(offs[i]):int(offs[i + 1])], var_grns[i], mm_dtype)
                for i in range(len(input_dims))]
    stacked = jnp.stack(var_outs, axis=2)                    # (B, T, V, H)
    flat = jnp.concatenate(var_outs, axis=-1)                # (B, T, V*H)
    logits = _grn_ref(flat, weight_grn, mm_dtype)
    weights = jax.nn.softmax(logits, axis=-1)
    out = jnp.sum(stacked * weights[..., None], axis=2)
    return out, weights


# ----------------------------------- main ------------------------------------
if __name__ == "__main__":
    key = jax.random.PRNGKey(0)
    kx, kp = jax.random.split(key)
    x = jax.random.normal(kx, (B, T, D_TOTAL), jnp.float32)
    var_grns, weight_grn = init_vsn_params(kp, INPUT_DIMS, HIDDEN_DIM)
    packed = pack_vsn_params(var_grns, weight_grn, INPUT_DIMS, HIDDEN_DIM, MM_DTYPE)

    out, weights = variable_selection_network(x, packed, INPUT_DIMS, HIDDEN_DIM)
    out = jax.block_until_ready(out)
    weights = jax.block_until_ready(weights)

    assert out.shape == (B, T, HIDDEN_DIM)
    assert weights.shape == (B, T, NUM_VARS)

    # Tight check vs a pure-JAX reference with the identical matmul precision
    # policy (bf16 operands / f32 accumulation; f32 LayerNorm, softmax, sum).
    out_ref, w_ref = vsn_ref(x, var_grns, weight_grn, INPUT_DIMS, MM_DTYPE)
    assert jnp.allclose(out, out_ref, atol=2e-3, rtol=2e-3), \
        float(jnp.max(jnp.abs(out - out_ref)))
    assert jnp.allclose(weights, w_ref, atol=2e-3, rtol=2e-3), \
        float(jnp.max(jnp.abs(weights - w_ref)))

    # Loose sanity check vs a full-f32 reference (bounds bf16-operand error).
    out_f32, w_f32 = vsn_ref(x, var_grns, weight_grn, INPUT_DIMS, jnp.float32)
    assert float(jnp.max(jnp.abs(out - out_f32))) < 0.1
    assert float(jnp.max(jnp.abs(weights - w_f32))) < 0.1

    print("KERNEL_OK")
</pallas_src>

<mosaic_0001>
module attributes {stable_mosaic.version = 11 : i64} {
  func.func @_vsn_kernel(%arg0: i32, %arg1: memref<8x16xf32, #tpu.memory_space<vmem>>, %arg2: memref<112x224xbf16, #tpu.memory_space<vmem>>, %arg3: memref<128x131xbf16, #tpu.memory_space<vmem>>, %arg4: memref<208x96xbf16, #tpu.memory_space<vmem>>, %arg5: memref<16x96xf32, #tpu.memory_space<vmem>>, %arg6: memref<8x64xf32, #tpu.memory_space<vmem>>) attributes {dimension_semantics = [#tpu.dimension_semantics<parallel>], iteration_bounds = array<i64: 2>, scalar_prefetch = 0 : i64, scratch_operands = 0 : i64, tpu.core_type = #tpu.core_type<tc>, window_params = [{transform_indices = @transform_0, window_bounds = array<i64: 8, 16>}, {pipeline_mode = #tpu.pipeline_mode<synchronous>, transform_indices = @transform_1, window_bounds = array<i64: 112, 224>}, {pipeline_mode = #tpu.pipeline_mode<synchronous>, transform_indices = @transform_2, window_bounds = array<i64: 128, 131>}, {pipeline_mode = #tpu.pipeline_mode<synchronous>, transform_indices = @transform_3, window_bounds = array<i64: 208, 96>}, {pipeline_mode = #tpu.pipeline_mode<synchronous>, transform_indices = @transform_4, window_bounds = array<i64: 16, 96>}, {transform_indices = @transform_5, window_bounds = array<i64: 8, 64>}]} {
    %c0 = arith.constant 0 : index
    %c0_0 = arith.constant 0 : index
    %0 = vector.load %arg2[%c0, %c0_0] : memref<112x224xbf16, #tpu.memory_space<vmem>>, vector<16x224xbf16>
    %c16 = arith.constant 16 : index
    %c0_1 = arith.constant 0 : index
    %1 = vector.load %arg2[%c16, %c0_1] : memref<112x224xbf16, #tpu.memory_space<vmem>>, vector<96x96xbf16>
    %c0_2 = arith.constant 0 : index
    %c0_3 = arith.constant 0 : index
    %2 = vector.load %arg3[%c0_2, %c0_3] : memref<128x131xbf16, #tpu.memory_space<vmem>>, vector<96x131xbf16>
    %c96 = arith.constant 96 : index
    %c0_4 = arith.constant 0 : index
    %3 = vector.load %arg3[%c96, %c0_4] : memref<128x131xbf16, #tpu.memory_space<vmem>>, vector<32x3xbf16>
    %c0_5 = arith.constant 0 : index
    %c0_6 = arith.constant 0 : index
    %4 = vector.load %arg4[%c0_5, %c0_6] : memref<208x96xbf16, #tpu.memory_space<vmem>>, vector<96x96xbf16>
    %c96_7 = arith.constant 96 : index
    %c0_8 = arith.constant 0 : index
    %5 = vector.load %arg4[%c96_7, %c0_8] : memref<208x96xbf16, #tpu.memory_space<vmem>>, vector<96x32xbf16>
    %c192 = arith.constant 192 : index
    %c0_9 = arith.constant 0 : index
    %6 = vector.load %arg4[%c192, %c0_9] : memref<208x96xbf16, #tpu.memory_space<vmem>>, vector<16x96xbf16>
    %c0_10 = arith.constant 0 : index
    %c0_11 = arith.constant 0 : index
    %7 = vector.load %arg5[%c0_10, %c0_11] : memref<16x96xf32, #tpu.memory_space<vmem>>, vector<16x96xf32>
    %8 = vector.extract_strided_slice %7 {offsets = [0, 0], sizes = [1, 96], strides = [1, 1]} : vector<16x96xf32> to vector<1x96xf32>
    %9 = vector.extract_strided_slice %7 {offsets = [1, 0], sizes = [1, 96], strides = [1, 1]} : vector<16x96xf32> to vector<1x96xf32>
    %10 = vector.extract_strided_slice %7 {offsets = [2, 0], sizes = [1, 96], strides = [1, 1]} : vector<16x96xf32> to vector<1x96xf32>
    %11 = vector.extract_strided_slice %7 {offsets = [3, 0], sizes = [1, 96], strides = [1, 1]} : vector<16x96xf32> to vector<1x96xf32>
    %12 = vector.extract_strided_slice %7 {offsets = [4, 0], sizes = [1, 96], strides = [1, 1]} : vector<16x96xf32> to vector<1x96xf32>
    %13 = vector.extract_strided_slice %7 {offsets = [5, 0], sizes = [1, 32], strides = [1, 1]} : vector<16x96xf32> to vector<1x32xf32>
    %14 = vector.extract_strided_slice %7 {offsets = [6, 0], sizes = [1, 3], strides = [1, 1]} : vector<16x96xf32> to vector<1x3xf32>
    %15 = vector.extract_strided_slice %7 {offsets = [7, 0], sizes = [1, 3], strides = [1, 1]} : vector<16x96xf32> to vector<1x3xf32>
    %16 = vector.extract_strided_slice %7 {offsets = [8, 0], sizes = [1, 3], strides = [1, 1]} : vector<16x96xf32> to vector<1x3xf32>
    %17 = vector.extract_strided_slice %7 {offsets = [9, 0], sizes = [1, 3], strides = [1, 1]} : vector<16x96xf32> to vector<1x3xf32>
    %c0_12 = arith.constant 0 : index
    %c0_13 = arith.constant 0 : index
    %18 = vector.load %arg1[%c0_12, %c0_13] : memref<8x16xf32, #tpu.memory_space<vmem>>, vector<8x16xf32>
    %19 = arith.truncf %18 : vector<8x16xf32> to vector<8x16xbf16>
    %cst = arith.constant dense<0.000000e+00> : vector<8x224xf32>
    %20 = tpu.matmul %19, %0, %cst {dimension_numbers = #tpu.dot_dimension_numbers<[1], [0], [0], [1], [0, 0, 1, 1], [], []>} : vector<8x16xbf16>, vector<16x224xbf16>, vector<8x224xf32> -> vector<8x224xf32>
    %21 = vector.extract_strided_slice %20 {offsets = [0, 0], sizes = [8, 96], strides = [1, 1]} : vector<8x224xf32> to vector<8x96xf32>
    %22 = vector.broadcast %8 : vector<1x96xf32> to vector<8x96xf32>
    %23 = arith.addf %21, %22 : vector<8x96xf32>
    %cst_14 = arith.constant 5.000000e-01 : f32
    %24 = vector.broadcast %cst_14 : f32 to vector<8x96xf32>
    %25 = arith.mulf %24, %23 : vector<8x96xf32>
    %cst_15 = arith.constant 0.707106769 : f32
    %26 = vector.broadcast %cst_15 : f32 to vector<8x96xf32>
    %27 = arith.mulf %23, %26 : vector<8x96xf32>
    %28 = math.erf %27 : vector<8x96xf32>
    %cst_16 = arith.constant 1.000000e+00 : f32
    %29 = vector.broadcast %cst_16 : f32 to vector<8x96xf32>
    %30 = arith.addf %29, %28 : vector<8x96xf32>
    %31 = arith.mulf %25, %30 : vector<8x96xf32>
    %32 = vector.extract_strided_slice %20 {offsets = [0, 128], sizes = [8, 96], strides = [1, 1]} : vector<8x224xf32> to vector<8x96xf32>
    %33 = vector.broadcast %10 : vector<1x96xf32> to vector<8x96xf32>
    %34 = arith.addf %32, %33 : vector<8x96xf32>
    %35 = arith.truncf %31 : vector<8x96xf32> to vector<8x96xbf16>
    %cst_17 = arith.constant dense<0.000000e+00> : vector<8x96xf32>
    %36 = tpu.matmul %35, %1, %cst_17 {dimension_numbers = #tpu.dot_dimension_numbers<[1], [0], [0], [1], [0, 0, 1, 1], [], []>} : vector<8x96xbf16>, vector<96x96xbf16>, vector<8x96xf32> -> vector<8x96xf32>
    %37 = vector.broadcast %9 : vector<1x96xf32> to vector<8x96xf32>
    %38 = arith.addf %36, %37 : vector<8x96xf32>
    %39 = arith.negf %38 : vector<8x96xf32>
    %40 = math.exp %39 : vector<8x96xf32>
    %cst_18 = arith.constant 1.000000e+00 : f32
    %41 = vector.broadcast %cst_18 : f32 to vector<8x96xf32>
    %42 = arith.addf %41, %40 : vector<8x96xf32>
    %43 = arith.divf %41, %42 : vector<8x96xf32>
    %44 = arith.mulf %38, %43 : vector<8x96xf32>
    %45 = arith.addf %44, %34 : vector<8x96xf32>
    %46 = arith.truncf %45 : vector<8x96xf32> to vector<8x96xbf16>
    %47 = arith.extf %46 : vector<8x96xbf16> to vector<8x96xf32>
    %48 = arith.subf %45, %47 : vector<8x96xf32>
    %49 = arith.truncf %48 : vector<8x96xf32> to vector<8x96xbf16>
    %cst_19 = arith.constant dense<0.000000e+00> : vector<8x96xf32>
    %50 = tpu.matmul %46, %4, %cst_19 {dimension_numbers = #tpu.dot_dimension_numbers<[1], [0], [0], [1], [0, 0, 1, 1], [], []>} : vector<8x96xbf16>, vector<96x96xbf16>, vector<8x96xf32> -> vector<8x96xf32>
    %cst_20 = arith.constant dense<0.000000e+00> : vector<8x96xf32>
    %51 = tpu.matmul %49, %4, %cst_20 {dimension_numbers = #tpu.dot_dimension_numbers<[1], [0], [0], [1], [0, 0, 1, 1], [], []>} : vector<8x96xbf16>, vector<96x96xbf16>, vector<8x96xf32> -> vector<8x96xf32>
    %52 = arith.addf %50, %51 : vector<8x96xf32>
    %cst_21 = arith.constant 3.125000e-02 : f32
    %53 = vector.broadcast %cst_21 : f32 to vector<8x96xf32>
    %54 = arith.mulf %52, %53 : vector<8x96xf32>
    %55 = arith.mulf %45, %45 : vector<8x96xf32>
    %56 = arith.truncf %55 : vector<8x96xf32> to vector<8x96xbf16>
    %57 = arith.extf %56 : vector<8x96xbf16> to vector<8x96xf32>
    %58 = arith.subf %55, %57 : vector<8x96xf32>
    %59 = arith.truncf %58 : vector<8x96xf32> to vector<8x96xbf16>
    %cst_22 = arith.constant dense<0.000000e+00> : vector<8x96xf32>
    %60 = tpu.matmul %56, %4, %cst_22 {dimension_numbers = #tpu.dot_dimension_numbers<[1], [0], [0], [1], [0, 0, 1, 1], [], []>} : vector<8x96xbf16>, vector<96x96xbf16>, vector<8x96xf32> -> vector<8x96xf32>
    %cst_23 = arith.constant dense<0.000000e+00> : vector<8x96xf32>
    %61 = tpu.matmul %59, %4, %cst_23 {dimension_numbers = #tpu.dot_dimension_numbers<[1], [0], [0], [1], [0, 0, 1, 1], [], []>} : vector<8x96xbf16>, vector<96x96xbf16>, vector<8x96xf32> -> vector<8x96xf32>
    %62 = arith.addf %60, %61 : vector<8x96xf32>
    %cst_24 = arith.constant 3.125000e-02 : f32
    %63 = vector.broadcast %cst_24 : f32 to vector<8x96xf32>
    %64 = arith.mulf %62, %63 : vector<8x96xf32>
    %65 = arith.mulf %54, %54 : vector<8x96xf32>
    %66 = arith.subf %64, %65 : vector<8x96xf32>
    %67 = arith.subf %45, %54 : vector<8x96xf32>
    %cst_25 = arith.constant 9.99999974E-6 : f32
    %68 = vector.broadcast %cst_25 : f32 to vector<8x96xf32>
    %69 = arith.addf %66, %68 : vector<8x96xf32>
    %70 = math.rsqrt %69 : vector<8x96xf32>
    %71 = arith.mulf %67, %70 : vector<8x96xf32>
    %72 = vector.broadcast %11 : vector<1x96xf32> to vector<8x96xf32>
    %73 = arith.mulf %71, %72 : vector<8x96xf32>
    %74 = vector.broadcast %12 : vector<1x96xf32> to vector<8x96xf32>
    %75 = arith.addf %73, %74 : vector<8x96xf32>
    %76 = arith.truncf %75 : vector<8x96xf32> to vector<8x96xbf16>
    %cst_26 = arith.constant dense<0.000000e+00> : vector<8x131xf32>
    %77 = tpu.matmul %76, %2, %cst_26 {dimension_numbers = #tpu.dot_dimension_numbers<[1], [0], [0], [1], [0, 0, 1, 1], [], []>} : vector<8x96xbf16>, vector<96x131xbf16>, vector<8x131xf32> -> vector<8x131xf32>
    %78 = vector.extract_strided_slice %77 {offsets = [0, 0], sizes = [8, 32], strides = [1, 1]} : vector<8x131xf32> to vector<8x32xf32>
    %79 = vector.broadcast %13 : vector<1x32xf32> to vector<8x32xf32>
    %80 = arith.addf %78, %79 : vector<8x32xf32>
    %cst_27 = arith.constant 5.000000e-01 : f32
    %81 = vector.broadcast %cst_27 : f32 to vector<8x32xf32>
    %82 = arith.mulf %81, %80 : vector<8x32xf32>
    %cst_28 = arith.constant 0.707106769 : f32
    %83 = vector.broadcast %cst_28 : f32 to vector<8x32xf32>
    %84 = arith.mulf %80, %83 : vector<8x32xf32>
    %85 = math.erf %84 : vector<8x32xf32>
    %cst_29 = arith.constant 1.000000e+00 : f32
    %86 = vector.broadcast %cst_29 : f32 to vector<8x32xf32>
    %87 = arith.addf %86, %85 : vector<8x32xf32>
    %88 = arith.mulf %82, %87 : vector<8x32xf32>
    %89 = vector.extract_strided_slice %77 {offsets = [0, 128], sizes = [8, 3], strides = [1, 1]} : vector<8x131xf32> to vector<8x3xf32>
    %90 = vector.broadcast %15 : vector<1x3xf32> to vector<8x3xf32>
    %91 = arith.addf %89, %90 : vector<8x3xf32>
    %92 = arith.truncf %88 : vector<8x32xf32> to vector<8x32xbf16>
    %cst_30 = arith.constant dense<0.000000e+00> : vector<8x3xf32>
    %93 = tpu.matmul %92, %3, %cst_30 {dimension_numbers = #tpu.dot_dimension_numbers<[1], [0], [0], [1], [0, 0, 1, 1], [], []>} : vector<8x32xbf16>, vector<32x3xbf16>, vector<8x3xf32> -> vector<8x3xf32>
    %94 = vector.broadcast %14 : vector<1x3xf32> to vector<8x3xf32>
    %95 = arith.addf %93, %94 : vector<8x3xf32>
    %96 = arith.negf %95 : vector<8x3xf32>
    %97 = math.exp %96 : vector<8x3xf32>
    %cst_31 = arith.constant 1.000000e+00 : f32
    %98 = vector.broadcast %cst_31 : f32 to vector<8x3xf32>
    %99 = arith.addf %98, %97 : vector<8x3xf32>
    %100 = arith.divf %98, %99 : vector<8x3xf32>
    %101 = arith.mulf %95, %100 : vector<8x3xf32>
    %102 = arith.addf %101, %91 : vector<8x3xf32>
    %cst_32 = arith.constant dense<0.000000e+00> : vector<8xf32>
    %103 = vector.multi_reduction <add>, %102, %cst_32 [1] : vector<8x3xf32> to vector<8xf32>
    %104 = vector.shape_cast %103 : vector<8xf32> to vector<8x1xf32>
    %cst_33 = arith.constant 3.000000e+00 : f32
    %105 = vector.broadcast %cst_33 : f32 to vector<8x1xf32>
    %106 = arith.divf %104, %105 : vector<8x1xf32>
    %107 = arith.mulf %102, %102 : vector<8x3xf32>
    %cst_34 = arith.constant dense<0.000000e+00> : vector<8xf32>
    %108 = vector.multi_reduction <add>, %107, %cst_34 [1] : vector<8x3xf32> to vector<8xf32>
    %109 = vector.shape_cast %108 : vector<8xf32> to vector<8x1xf32>
    %cst_35 = arith.constant 3.000000e+00 : f32
    %110 = vector.broadcast %cst_35 : f32 to vector<8x1xf32>
    %111 = arith.divf %109, %110 : vector<8x1xf32>
    %112 = arith.mulf %106, %106 : vector<8x1xf32>
    %113 = arith.subf %111, %112 : vector<8x1xf32>
    %114 = vector.broadcast %106 : vector<8x1xf32> to vector<8x3xf32>
    %115 = arith.subf %102, %114 : vector<8x3xf32>
    %cst_36 = arith.constant 9.99999974E-6 : f32
    %116 = vector.broadcast %cst_36 : f32 to vector<8x1xf32>
    %117 = arith.addf %113, %116 : vector<8x1xf32>
    %118 = math.rsqrt %117 : vector<8x1xf32>
    %119 = vector.broadcast %118 : vector<8x1xf32> to vector<8x3xf32>
    %120 = arith.mulf %115, %119 : vector<8x3xf32>
    %121 = vector.broadcast %16 : vector<1x3xf32> to vector<8x3xf32>
    %122 = arith.mulf %120, %121 : vector<8x3xf32>
    %123 = vector.broadcast %17 : vector<1x3xf32> to vector<8x3xf32>
    %124 = arith.addf %122, %123 : vector<8x3xf32>
    %cst_37 = arith.constant dense<0xFF800000> : vector<8xf32>
    %125 = vector.multi_reduction <maximumf>, %124, %cst_37 [1] : vector<8x3xf32> to vector<8xf32>
    %126 = vector.shape_cast %125 : vector<8xf32> to vector<8x1xf32>
    %127 = vector.broadcast %126 : vector<8x1xf32> to vector<8x3xf32>
    %128 = arith.subf %124, %127 : vector<8x3xf32>
    %129 = math.exp %128 : vector<8x3xf32>
    %cst_38 = arith.constant dense<0.000000e+00> : vector<8xf32>
    %130 = vector.multi_reduction <add>, %129, %cst_38 [1] : vector<8x3xf32> to vector<8xf32>
    %131 = vector.shape_cast %130 : vector<8xf32> to vector<8x1xf32>
    %132 = tpu.reciprocal %131 {approx = true} : vector<8x1xf32> -> vector<8x1xf32>
    %133 = arith.mulf %131, %132 : vector<8x1xf32>
    %cst_39 = arith.constant 2.000000e+00 : f32
    %134 = vector.broadcast %cst_39 : f32 to vector<8x1xf32>
    %135 = arith.subf %134, %133 : vector<8x1xf32>
    %136 = arith.mulf %132, %135 : vector<8x1xf32>
    %137 = vector.broadcast %136 : vector<8x1xf32> to vector<8x3xf32>
    %138 = arith.mulf %129, %137 : vector<8x3xf32>
    %cst_40 = arith.constant 0.000000e+00 : f32
    %139 = vector.broadcast %cst_40 : f32 to vector<8x13xf32>
    %140 = tpu.concatenate %138, %139 in 1 : vector<8x3xf32>, vector<8x13xf32> -> vector<8x16xf32>
    %141 = arith.truncf %140 : vector<8x16xf32> to vector<8x16xbf16>
    %142 = arith.extf %141 : vector<8x16xbf16> to vector<8x16xf32>
    %143 = arith.subf %140, %142 : vector<8x16xf32>
    %144 = arith.truncf %143 : vector<8x16xf32> to vector<8x16xbf16>
    %cst_41 = arith.constant dense<0.000000e+00> : vector<8x96xf32>
    %145 = tpu.matmul %141, %6, %cst_41 {dimension_numbers = #tpu.dot_dimension_numbers<[1], [0], [0], [1], [0, 0, 1, 1], [], []>} : vector<8x16xbf16>, vector<16x96xbf16>, vector<8x96xf32> -> vector<8x96xf32>
    %cst_42 = arith.constant dense<0.000000e+00> : vector<8x96xf32>
    %146 = tpu.matmul %144, %6, %cst_42 {dimension_numbers = #tpu.dot_dimension_numbers<[1], [0], [0], [1], [0, 0, 1, 1], [], []>} : vector<8x16xbf16>, vector<16x96xbf16>, vector<8x96xf32> -> vector<8x96xf32>
    %147 = arith.addf %145, %146 : vector<8x96xf32>
    %148 = arith.mulf %75, %147 : vector<8x96xf32>
    %149 = arith.truncf %148 : vector<8x96xf32> to vector<8x96xbf16>
    %150 = arith.extf %149 : vector<8x96xbf16> to vector<8x96xf32>
    %151 = arith.subf %148, %150 : vector<8x96xf32>
    %152 = arith.truncf %151 : vector<8x96xf32> to vector<8x96xbf16>
    %cst_43 = arith.constant dense<0.000000e+00> : vector<8x32xf32>
    %153 = tpu.matmul %149, %5, %cst_43 {dimension_numbers = #tpu.dot_dimension_numbers<[1], [0], [0], [1], [0, 0, 1, 1], [], []>} : vector<8x96xbf16>, vector<96x32xbf16>, vector<8x32xf32> -> vector<8x32xf32>
    %cst_44 = arith.constant dense<0.000000e+00> : vector<8x32xf32>
    %154 = tpu.matmul %152, %5, %cst_44 {dimension_numbers = #tpu.dot_dimension_numbers<[1], [0], [0], [1], [0, 0, 1, 1], [], []>} : vector<8x96xbf16>, vector<96x32xbf16>, vector<8x32xf32> -> vector<8x32xf32>
    %155 = arith.addf %153, %154 : vector<8x32xf32>
    %cst_45 = arith.constant 0.000000e+00 : f32
    %156 = vector.broadcast %cst_45 : f32 to vector<8x29xf32>
    %157 = tpu.concatenate %155, %138, %156 in 1 : vector<8x32xf32>, vector<8x3xf32>, vector<8x29xf32> -> vector<8x64xf32>
    %c0_46 = arith.constant 0 : index
    %c0_47 = arith.constant 0 : index
    %158 = vector.load %arg6[%c0_46, %c0_47] : memref<8x64xf32, #tpu.memory_space<vmem>>, vector<8x64xf32>
    tpu.vector_store %arg6[%c0_46, %c0_47], %157 {strides = array<i32>} : memref<8x64xf32, #tpu.memory_space<vmem>>, vector<8x64xf32>,
    return
  }
  func.func @transform_0(%arg0: i32) -> (i32, i32) {
    %c0_i32 = arith.constant 0 : i32
    %c0_i32_0 = arith.constant 0 : i32
    return %arg0, %c0_i32 : i32, i32
  }
  func.func @transform_1(%arg0: i32) -> (i32, i32) {
    %c0_i32 = arith.constant 0 : i32
    %c0_i32_0 = arith.constant 0 : i32
    %c0_i32_1 = arith.constant 0 : i32
    return %c0_i32, %c0_i32_0 : i32, i32
  }
  func.func @transform_2(%arg0: i32) -> (i32, i32) {
    %c0_i32 = arith.constant 0 : i32
    %c0_i32_0 = arith.constant 0 : i32
    %c0_i32_1 = arith.constant 0 : i32
    return %c0_i32, %c0_i32_0 : i32, i32
  }
  func.func @transform_3(%arg0: i32) -> (i32, i32) {
    %c0_i32 = arith.constant 0 : i32
    %c0_i32_0 = arith.constant 0 : i32
    %c0_i32_1 = arith.constant 0 : i32
    return %c0_i32, %c0_i32_0 : i32, i32
  }
  func.func @transform_4(%arg0: i32) -> (i32, i32) {
    %c0_i32 = arith.constant 0 : i32
    %c0_i32_0 = arith.constant 0 : i32
    %c0_i32_1 = arith.constant 0 : i32
    return %c0_i32, %c0_i32_0 : i32, i32
  }
  func.func @transform_5(%arg0: i32) -> (i32, i32) {
    %c0_i32 = arith.constant 0 : i32
    %c0_i32_0 = arith.constant 0 : i32
    return %arg0, %c0_i32 : i32, i32
  }
}

</mosaic_0001>

<llo_original>
// kernel: tpu_custom_call.1
$region0: #{tpu_custom_call.1}
  #allocation0 [shape = 'u32[]', space=smem, size = 0x4, offset = 0x4, fixed_abs, tag = 'smem constant byte address 0x4 - core index']
  #allocation1 [shape = 'u32[72,128]{1,0:T(1,128)}', space=vmem, size = 0x9000, scoped, tag = 'internal scratch']
  %s0 = inlined_call_operand.vmem [shape: f32[16,16], index: 0, kind: input, shape index: {}]
  %s1 = inlined_call_operand.vmem [shape: bf16[112,224], index: 1, kind: input, shape index: {}]
  %s2 = inlined_call_operand.vmem [shape: bf16[128,131], index: 2, kind: input, shape index: {}]
  %s3 = inlined_call_operand.vmem [shape: bf16[208,96], index: 3, kind: input, shape index: {}]
  %s4 = inlined_call_operand.vmem [shape: f32[16,96], index: 4, kind: input, shape index: {}]
  %s5 = inlined_call_operand.hbm [shape: f32[16,64], index: 5, kind: output, shape index: {}]
  %s6 = sld [smem:[#allocation0]]
  $region53: #{tpu_custom_call.1} parent=0
    _
  %s8 = ssub.s32 1, %s6
  %s9 = scalar_select 0, %s8, %s6
  $region1: #{tpu_custom_call.1} parent=0
    #allocation2 [shape = 'u8[8192]{0}', space=vmem, size = 0x2000, scoped, tag = 'output window, operand 0']
    #allocation3 [shape = 's32[2]{0}', space=sflag, size = 0x8, scoped, tag = 'scoped memory for tpu_custom_call.1']
    %10 = vsyncpa [#allocation3], 0
    %s11 = scalar_lea.sflag [#allocation3], 1
    %12 = vsyncpa %s11, 0
    loop: start=0, step=1, limit=4
    $region2: #{tpu_custom_call.1} parent=1 // loop_pre_header
      _
    $region3: #{tpu_custom_call.1} parent=1 // loop_header
      %s14 = sphi 0, %s18
      %p15 = scmp.ge.s32.totalorder %s14, 4
      %s24 = sphi 0, %s26
      %s27 = sphi 0, %s24
      %s28 = sphi 0, %s27
      %s44 = sphi 0, %s28
      %s48 = sphi 0, %s48
      %s50 = sphi 0, %s48
      %s51 = sphi 0, %s50
      %s65 = sphi 0, %s51
      %s69 = sphi 0, %s69
      %s71 = sphi 0, %s69
      %s72 = sphi 0, %s71
      %s86 = sphi 0, %s72
      %s90 = sphi 0, %s90
      %s92 = sphi 0, %s90
      %s93 = sphi 0, %s92
      %s107 = sphi 0, %s93
      %s111 = sphi 0, %s111
      %s113 = sphi 0, %s111
      %s114 = sphi 0, %s113
      %s128 = sphi 0, %s114
      %s134 = sphi 0, %s136
      %s137 = sphi 0, %s134
      %s138 = sphi 0, %s137
      %s154 = sphi 0, %s138
    $region4: #{tpu_custom_call.1} parent=1 // loop_header_branch
      %17 = sbr.rel (%p15) target = $region8
    $region5: #{tpu_custom_call.1} parent=1 // loop_body
      %s19 = ssub.s32 %s14, 1
      %s20 = ssub.s32 %s14, 2
      %s21 = sadd.s32 %s14, 1
      %s22 = ssub.s32 %s14, %s21
      %p23 = scmp.eq.s32.totalorder %s22, 0
      %s25 = sadd.s32 %s24, 1
      %s26 = scalar_select %p23, %s24, %s25
      %p29 = pneg %p23
      %p30 = scmp.eq.s32.totalorder %s14, 1
      %p31 = por %p29, %p30
      %p32 = scmp.ne.s32.totalorder %s24, %s27
      %p33 = scmp.eq.s32.totalorder %s14, 0
      %p34 = por %p32, %p33
      %p35 = scmp.ne.s32.totalorder %s24, %s27
      %p36 = scmp.eq.s32.totalorder %s19, 1
      %p37 = por %p35, %p36
      %p38 = scmp.ne.s32.totalorder %s27, %s28
      %p39 = scmp.eq.s32.totalorder %s19, 0
      %p40 = por %p38, %p39
      %p41 = scmp.ne.s32.totalorder %s27, %s28
      %p42 = scmp.eq.s32.totalorder %s20, 1
      %p43 = por %p41, %p42
      %p45 = scmp.ne.s32.totalorder %s28, %s44
      %p46 = scmp.eq.s32.totalorder %s20, 0
      %p47 = por %p45, %p46
      %s49 = sadd.s32 %s48, 1
      %p52 = scmp.eq.s32.totalorder %s14, 1
      %p53 = scmp.ne.s32.totalorder %s48, %s50
      %p54 = scmp.eq.s32.totalorder %s14, 0
      %p55 = por %p53, %p54
      %p56 = scmp.ne.s32.totalorder %s48, %s50
      %p57 = scmp.eq.s32.totalorder %s19, 1
      %p58 = por %p56, %p57
      %p59 = scmp.ne.s32.totalorder %s50, %s51
      %p60 = scmp.eq.s32.totalorder %s19, 0
      %p61 = por %p59, %p60
      %p62 = scmp.ne.s32.totalorder %s50, %s51
      %p63 = scmp.eq.s32.totalorder %s20, 1
      %p64 = por %p62, %p63
      %p66 = scmp.ne.s32.totalorder %s51, %s65
      %p67 = scmp.eq.s32.totalorder %s20, 0
      %p68 = por %p66, %p67
      %s70 = sadd.s32 %s69, 1
      %p73 = scmp.eq.s32.totalorder %s14, 1
      %p74 = scmp.ne.s32.totalorder %s69, %s71
      %p75 = scmp.eq.s32.totalorder %s14, 0
      %p76 = por %p74, %p75
      %p77 = scmp.ne.s32.totalorder %s69, %s71
      %p78 = scmp.eq.s32.totalorder %s19, 1
      %p79 = por %p77, %p78
      %p80 = scmp.ne.s32.totalorder %s71, %s72
      %p81 = scmp.eq.s32.totalorder %s19, 0
      %p82 = por %p80, %p81
      %p83 = scmp.ne.s32.totalorder %s71, %s72
      %p84 = scmp.eq.s32.totalorder %s20, 1
      %p85 = por %p83, %p84
      %p87 = scmp.ne.s32.totalorder %s72, %s86
      %p88 = scmp.eq.s32.totalorder %s20, 0
      %p89 = por %p87, %p88
      %s91 = sadd.s32 %s90, 1
      %p94 = scmp.eq.s32.totalorder %s14, 1
      %p95 = scmp.ne.s32.totalorder %s90, %s92
      %p96 = scmp.eq.s32.totalorder %s14, 0
      %p97 = por %p95, %p96
      %p98 = scmp.ne.s32.totalorder %s90, %s92
      %p99 = scmp.eq.s32.totalorder %s19, 1
      %p100 = por %p98, %p99
      %p101 = scmp.ne.s32.totalorder %s92, %s93
      %p102 = scmp.eq.s32.totalorder %s19, 0
      %p103 = por %p101, %p102
      %p104 = scmp.ne.s32.totalorder %s92, %s93
      %p105 = scmp.eq.s32.totalorder %s20, 1
      %p106 = por %p104, %p105
      %p108 = scmp.ne.s32.totalorder %s93, %s107
      %p109 = scmp.eq.s32.totalorder %s20, 0
      %p110 = por %p108, %p109
      %s112 = sadd.s32 %s111, 1
      %p115 = scmp.eq.s32.totalorder %s14, 1
      %p116 = scmp.ne.s32.totalorder %s111, %s113
      %p117 = scmp.eq.s32.totalorder %s14, 0
      %p118 = por %p116, %p117
      %p119 = scmp.ne.s32.totalorder %s111, %s113
      %p120 = scmp.eq.s32.totalorder %s19, 1
      %p121 = por %p119, %p120
      %p122 = scmp.ne.s32.totalorder %s113, %s114
      %p123 = scmp.eq.s32.totalorder %s19, 0
      %p124 = por %p122, %p123
      %p125 = scmp.ne.s32.totalorder %s113, %s114
      %p126 = scmp.eq.s32.totalorder %s20, 1
      %p127 = por %p125, %p126
      %p129 = scmp.ne.s32.totalorder %s114, %s128
      %p130 = scmp.eq.s32.totalorder %s20, 0
      %p131 = por %p129, %p130
      %s132 = ssub.s32 %s14, %s21
      %p133 = scmp.eq.s32.totalorder %s132, 0
      %s135 = sadd.s32 %s134, 1
      %s136 = scalar_select %p133, %s134, %s135
      %p139 = pneg %p133
      %p140 = scmp.eq.s32.totalorder %s14, 1
      %p141 = por %p139, %p140
      %p142 = scmp.ne.s32.totalorder %s134, %s137
      %p143 = scmp.eq.s32.totalorder %s14, 0
      %p144 = por %p142, %p143
      %p145 = scmp.ne.s32.totalorder %s134, %s137
      %p146 = scmp.eq.s32.totalorder %s19, 1
      %p147 = por %p145, %p146
      %p148 = scmp.ne.s32.totalorder %s137, %s138
      %p149 = scmp.eq.s32.totalorder %s19, 0
      %p150 = por %p148, %p149
      %p151 = scmp.ne.s32.totalorder %s137, %s138
      %p152 = scmp.eq.s32.totalorder %s20, 1
      %p153 = por %p151, %p152
      %p155 = scmp.ne.s32.totalorder %s138, %s154
      %p156 = scmp.eq.s32.totalorder %s20, 0
      %p157 = por %p155, %p156
      %p158 = scmp.le.s32.totalorder 1, %s14
      %p159 = scmp.lt.s32.totalorder %s14, 3
      %p160 = pnand %p158, %p159
      %p161 = pneg %p160
      // Predicated region
      $region9: #{tpu_custom_call.1} parent=5 // pred_check
        _
      $region10: #{tpu_custom_call.1} parent=5 // pred_check_branch
        %163 = sbr.rel (%p160) target = $region12
      $region11: #{tpu_custom_call.1} parent=5 // pred_region
        %s164 = ssub.s32 %s14, 1
        // Predicated region
        $region13: #{tpu_custom_call.1} parent=11 // pred_check
          %p165 = pneg %p61
        $region14: #{tpu_custom_call.1} parent=11 // pred_check_branch
          %167 = sbr.rel (%p165) target = $region16
        $region15: #{tpu_custom_call.1} parent=11 // pred_region
          _
        $region16: #{tpu_custom_call.1} parent=11 // pred_fallthru
          _
        // Predicated region
        $region17: #{tpu_custom_call.1} parent=11 // pred_check
          %p168 = pneg %p82
        $region18: #{tpu_custom_call.1} parent=11 // pred_check_branch
          %170 = sbr.rel (%p168) target = $region20
        $region19: #{tpu_custom_call.1} parent=11 // pred_region
          _
        $region20: #{tpu_custom_call.1} parent=11 // pred_fallthru
          _
        // Predicated region
        $region21: #{tpu_custom_call.1} parent=11 // pred_check
          %p171 = pneg %p103
        $region22: #{tpu_custom_call.1} parent=11 // pred_check_branch
          %173 = sbr.rel (%p171) target = $region24
        $region23: #{tpu_custom_call.1} parent=11 // pred_region
          _
        $region24: #{tpu_custom_call.1} parent=11 // pred_fallthru
          _
        // Predicated region
        $region25: #{tpu_custom_call.1} parent=11 // pred_check
          %p174 = pneg %p124
        $region26: #{tpu_custom_call.1} parent=11 // pred_check_branch
          %176 = sbr.rel (%p174) target = $region28
        $region27: #{tpu_custom_call.1} parent=11 // pred_region
          _
        $region28: #{tpu_custom_call.1} parent=11 // pred_fallthru
          _
      $region12: #{tpu_custom_call.1} parent=5 // pred_fallthru
        _
      %p177 = scmp.lt.s32.totalorder %s14, 2
      // Predicated region
      $region29: #{tpu_custom_call.1} parent=5 // pred_check
        %p178 = pneg %p177
      $region30: #{tpu_custom_call.1} parent=5 // pred_check_branch
        %180 = sbr.rel (%p178) target = $region32
      $region31: #{tpu_custom_call.1} parent=5 // pred_region
        // Predicated region
        $region33: #{tpu_custom_call.1} parent=31 // pred_check
          %p181 = pneg %p34
        $region34: #{tpu_custom_call.1} parent=31 // pred_check_branch
          %183 = sbr.rel (%p181) target = $region36
        $region35: #{tpu_custom_call.1} parent=31 // pred_region
          %p184 = scmp.lt.s32.totalorder %s14, 1
          %s185 = scalar_select %p184, %s14, 1
          %s186 = smul.addr %s185, 8
          %s187 = scalar_lea.vmem %s0, %s186
        $region36: #{tpu_custom_call.1} parent=31 // pred_fallthru
          _
      $region32: #{tpu_custom_call.1} parent=5 // pred_fallthru
        _
      %p188 = scmp.le.s32.totalorder 1, %s14
      %p189 = scmp.lt.s32.totalorder %s14, 3
      %p190 = pnand %p188, %p189
      %p191 = pneg %p190
      // Predicated region
      $region37: #{tpu_custom_call.1} parent=5 // pred_check
        _
      $region38: #{tpu_custom_call.1} parent=5 // pred_check_branch
        %193 = sbr.rel (%p190) target = $region40
      $region39: #{tpu_custom_call.1} parent=5 // pred_region
        %s194 = ssub.s32 %s14, 1
        %p195 = scmp.lt.s32.totalorder %s19, 1
        %s196 = scalar_select %p195, %s19, 1
        %s197 = smul.addr %s196, 8
        %s198 = scalar_lea.vmem %s0, %s197
        %p199 = pneg %p40
        %p200 = pneg %p37
        %p201 = pneg %p61
        %p202 = pneg %p58
        %p203 = pneg %p82
        %p204 = pneg %p79
        %p205 = pneg %p103
        %p206 = pneg %p100
        %p207 = pneg %p124
        %p208 = pneg %p121
        %p209 = pneg %p150
        %p210 = pneg %p147
        %s211 = sand.u32 %s137, 1
        %s212 = scalar_lea.sflag [#allocation3], %s211
        %s213 = sand.u32 %s137, 1
        %s214 = smul.addr %s213, 8
        %s215 = scalar_lea.vmem [#allocation2], %s214
        %p216 = scmp.lt.s32.totalorder %s19, 1
        %s217 = scalar_select %p216, %s19, 1
        %s218 = smul.addr %s217, 8
        %s219 = scalar_lea.vmem %s0, %s218
        %v221 = vld [vmem:[%s1] sm:$0xff]
        %v222 = vld [vmem:[%s1 + $0x8] sm:$0xff]
        %v223 = vld [vmem:[%s1 + $0x10] sm:$0xf]
        %v224 = vld [vmem:[%s1 + $0x18] sm:$0xf]
        %v225 = vld [vmem:[%s1 + $0x20] sm:$0xf]
        %v226 = vld [vmem:[%s1 + $0x28] sm:$0xf]
        %v227 = vld [vmem:[%s1 + $0x30] sm:$0xf]
        %v228 = vld [vmem:[%s1 + $0x38] sm:$0xf]
        %v229 = vld [vmem:[%s1 + $0x40] sm:$0xf]
        %v230 = vld [vmem:[%s1 + $0x48] sm:$0xf]
        %v231 = vld [vmem:[%s1 + $0x50] sm:$0xf]
        %v232 = vld [vmem:[%s1 + $0x58] sm:$0xf]
        %v233 = vld [vmem:[%s1 + $0x60] sm:$0xf]
        %v234 = vld [vmem:[%s1 + $0x68] sm:$0xf]
        %v235 = vld [vmem:[%s2] sm:$0xff]
        %v236 = vld [vmem:[%s2 + $0x8] sm:$0xff]
        %v237 = vld [vmem:[%s2 + $0x10] sm:$0xff]
        %v238 = vld [vmem:[%s2 + $0x18] sm:$0xff]
        %v239 = vld [vmem:[%s2 + $0x20] sm:$0xff]
        %v240 = vld [vmem:[%s2 + $0x28] sm:$0xff]
        %v241 = vld [vmem:[%s2 + $0x30] sm:$0xff]
        %v242 = vld [vmem:[%s2 + $0x38] sm:$0xff]
        %v243 = vld [vmem:[%s2 + $0x40] sm:$0xff]
        %v244 = vld [vmem:[%s2 + $0x48] sm:$0xff]
        %v245 = vld [vmem:[%s2 + $0x50] sm:$0xff]
        %v246 = vld [vmem:[%s2 + $0x58] sm:$0xff]
        %v247 = vld [vmem:[%s2 + $0x60] sm:$0xf]
        %v248 = vld [vmem:[%s2 + $0x68] sm:$0xf]
        %v249 = vld [vmem:[%s2 + $0x70] sm:$0xf]
        %v250 = vld [vmem:[%s2 + $0x78] sm:$0xf]
        %v251 = vld [vmem:[%s3] sm:$0xf]
        %v252 = vld [vmem:[%s3 + $0x4] sm:$0xf]
        %v253 = vld [vmem:[%s3 + $0x8] sm:$0xf]
        %v254 = vld [vmem:[%s3 + $0xc] sm:$0xf]
        %v255 = vld [vmem:[%s3 + $0x10] sm:$0xf]
        %v256 = vld [vmem:[%s3 + $0x14] sm:$0xf]
        %v257 = vld [vmem:[%s3 + $0x18] sm:$0xf]
        %v258 = vld [vmem:[%s3 + $0x1c] sm:$0xf]
        %v259 = vld [vmem:[%s3 + $0x20] sm:$0xf]
        %v260 = vld [vmem:[%s3 + $0x24] sm:$0xf]
        %v261 = vld [vmem:[%s3 + $0x28] sm:$0xf]
        %v262 = vld [vmem:[%s3 + $0x2c] sm:$0xf]
        %v263 = vld [vmem:[%s3 + $0x30] sm:$0xf]
        %v264 = vld [vmem:[%s3 + $0x34] sm:$0xf]
        %v265 = vld [vmem:[%s3 + $0x38] sm:$0xf]
        %v266 = vld [vmem:[%s3 + $0x3c] sm:$0xf]
        %v267 = vld [vmem:[%s3 + $0x40] sm:$0xf]
        %v268 = vld [vmem:[%s3 + $0x44] sm:$0xf]
        %v269 = vld [vmem:[%s3 + $0x48] sm:$0xf]
        %v270 = vld [vmem:[%s3 + $0x4c] sm:$0xf]
        %v271 = vld [vmem:[%s3 + $0x50] sm:$0xf]
        %v272 = vld [vmem:[%s3 + $0x54] sm:$0xf]
        %v273 = vld [vmem:[%s3 + $0x58] sm:$0xf]
        %v274 = vld [vmem:[%s3 + $0x5c] sm:$0xf]
        %v275 = vld [vmem:[%s3 + $0x60] sm:$0xf]
        %v276 = vld [vmem:[%s3 + $0x64] sm:$0xf]
        %v277 = vld [vmem:[%s4] sm:$0xff]
        %v278 = vld [vmem:[%s4 + $0x8] sm:$0xff]
        %v279 = vld [vmem:[%s219] sm:$0xff]
        %v280 = vpack.c.bf16 %v279, %v279
        %v283 = vunpack.c.l.b16 %v221
        %v284 = vunpack.c.h.b16 %v221
        %v285 = vunpack.c.l.b16 %v222
        %v286 = vunpack.c.h.b16 %v222
        %v287 = vpack.c.b16 %v285, %v283
        %v288 = vpack.c.b16 %v286, %v284
        %vm291 = vcmask 130048
        %v293 = vsel %vm291, %v280, 0
        %295 = vmatpush.bf16.msra.mxu0 0
        %296 = vmatpush.bf16.msra.mxu0 0
        %297 = vmatpush.bf16.msra.mxu0 0
        %298 = vmatpush.bf16.msra.mxu0 0
        %299 = vmatpush.bf16.msra.mxu0 0
        %300 = vmatpush.bf16.msra.mxu0 0
        %301 = vmatpush.bf16.msra.mxu0 0
        %302 = vmatpush.bf16.msra.mxu0 %v287
        %303 = vmatmul.bf16.gmra.mxu0 %v293
        %v304 = vpop.f32.mrf.mxu0
        %v305 = vadd.f32 0.0, %v304
        %v306 = vpop.f32.mrf.mxu0
        %307 = vdwg.mxu0
        %308 = vmatpush.bf16.msra.mxu0 0
        %309 = vmatpush.bf16.msra.mxu0 0
        %310 = vmatpush.bf16.msra.mxu0 0
        %311 = vmatpush.bf16.msra.mxu0 0
        %312 = vmatpush.bf16.msra.mxu0 0
        %313 = vmatpush.bf16.msra.mxu0 0
        %314 = vmatpush.bf16.msra.mxu0 0
        %315 = vmatpush.bf16.msra.mxu0 %v288
        %316 = vmatmul.bf16.gmra.mxu0 %v293
        %v317 = vpop.f32.mrf.mxu0
        %v318 = vadd.f32 0.0, %v317
        %v319 = vpop.f32.mrf.mxu0
        %320 = vdwg.mxu0
        %v321 = vperm.slane %v277, 0
        %v322 = vadd.f32 %v305, %v321
        %v323 = vmul.f32 %v322, 0.5
        %v324 = vmul.f32 %v322, 0.70710677
        %v325 = vmul.f32 %v324, %v324
        %v326 = vmin.f32 16.0, %v325
        %v327 = vmul.f32 %v326, 2.1237322e-06
        %v328 = vadd.f32 %v327, 0.00028619796
        %v329 = vmul.f32 %v326, %v328
        %v330 = vadd.f32 %v329, 0.0036580483
        %v331 = vmul.f32 %v326, %v330
        %v332 = vadd.f32 %v331, 0.05243302
        %v333 = vmul.f32 %v326, %v332
        %v334 = vadd.f32 %v333, 0.18741608
        %v335 = vmul.f32 %v326, %v334
        %v336 = vadd.f32 %v335, 1.1283791
        %v337 = vmul.f32 %v324, %v336
        %v338 = vmul.f32 %v326, 3.8918573e-05
        %v339 = vadd.f32 %v338, 0.001143296
        %v340 = vmul.f32 %v326, %v339
        %v341 = vadd.f32 %v340, 0.014752088
        %v342 = vmul.f32 %v326, %v341
        %v343 = vadd.f32 %v342, 0.112945676
        %v344 = vmul.f32 %v326, %v343
        %v345 = vadd.f32 %v344, 0.4994258
        %v346 = vmul.f32 %v326, %v345
        %v347 = vadd.f32 %v346, 1.0
        %v348 = vrcp.pop %v347
        %v349 = vmul.f32 %v347, %v348
        %v350 = vsub.f32 1.0, %v349
        %v351 = vmul.f32 %v348, %v350
        %v352 = vadd.f32 %v348, %v351
        %vm353 = vweird.f32 %v347
        %vm354 = vweird.f32 %v348
        %vm355 = vmor %vm353, %vm354
        %v356 = vsel %vm355, %v348, %v352
        %v357 = vand.u32 2147483647, %v347
        %vm358 = vcmp.eq.f32.partialorder %v357, 8.507059e+37
        %v359 = vand.u32 %v347, 2147483648
        %v360 = vor.u32 1.1754944e-38, %v359
        %v361 = vsel %vm358, %v360, %v356
        %v362 = vmul.f32 %v337, %v361
        %v363 = vmin.f32 %v362, 1.0
        %v364 = vmax.f32 %v363, -1.0
        %v365 = vadd.f32 %v364, 1.0
        %v366 = vmul.f32 %v323, %v365
        %v367 = vperm.slane %v277, 2
        %v368 = vadd.f32 %v318, %v367
        %v369 = vpack.c.bf16 %v366, %v366
        %v370 = vperm.slane %v277, 1
        %v383 = vunpack.c.l.b16 %v223
        %v384 = vunpack.c.l.b16 %v224
        %v385 = vunpack.c.l.b16 %v225
        %v386 = vunpack.c.l.b16 %v226
        %v387 = vunpack.c.l.b16 %v227
        %v388 = vunpack.c.l.b16 %v228
        %v389 = vunpack.c.l.b16 %v229
        %v390 = vunpack.c.l.b16 %v230
        %v391 = vunpack.c.l.b16 %v231
        %v392 = vunpack.c.l.b16 %v232
        %v393 = vunpack.c.l.b16 %v233
        %v394 = vunpack.c.l.b16 %v234
        %v395 = vpack.c.b16 %v384, %v383
        %v396 = vpack.c.b16 %v386, %v385
        %v397 = vpack.c.b16 %v388, %v387
        %v398 = vpack.c.b16 %v390, %v389
        %v399 = vpack.c.b16 %v392, %v391
        %v400 = vpack.c.b16 %v394, %v393
        %vm407 = vcmask 785408
        %v409 = vsel %vm407, %v369, 0
        %411 = vmatpush.bf16.msra.mxu0 0
        %412 = vmatpush.bf16.msra.mxu0 0
        %413 = vmatpush.bf16.msra.mxu0 %v400
        %414 = vmatpush.bf16.msra.mxu0 %v399
        %415 = vmatpush.bf16.msra.mxu0 %v398
        %416 = vmatpush.bf16.msra.mxu0 %v397
        %417 = vmatpush.bf16.msra.mxu0 %v396
        %418 = vmatpush.bf16.msra.mxu0 %v395
        %419 = vmatmul.bf16.gmra.mxu0 %v409
        %v420 = vpop.f32.mrf.mxu0
        %v421 = vadd.f32 %v370, %v420
        %v422 = vpop.f32.mrf.mxu0
        %423 = vdwg.mxu0
        %v424 = vxor.u32 %v421, 2147483648
        %v425 = vmul.f32 %v424, 1.442695
        %v426 = vpow.pop %v425
        %v427 = vadd.f32 %v426, 1.0
        %v428 = vrcp.pop %v427
        %v429 = vmul.f32 %v427, %v428
        %v430 = vsub.f32 1.0, %v429
        %v431 = vmul.f32 %v428, %v430
        %v432 = vadd.f32 %v428, %v431
        %vm433 = vweird.f32 %v427
        %vm434 = vweird.f32 %v428
        %vm435 = vmor %vm433, %vm434
        %v436 = vsel %vm435, %v428, %v432
        %v437 = vand.u32 2147483647, %v427
        %vm438 = vcmp.eq.f32.partialorder %v437, 8.507059e+37
        %v439 = vand.u32 %v427, 2147483648
        %v440 = vor.u32 1.1754944e-38, %v439
        %v441 = vsel %vm438, %v440, %v436
        %v442 = vmul.f32 1.0, %v441
        %v443 = vmul.f32 %v421, %v442
        %v444 = vadd.f32 %v443, %v368
        %v445 = vpack.c.bf16 %v444, %v444
        %v446 = vunpack.c.l.bf16 %v445
        %v447 = vsub.f32 %v444, %v446
        %v448 = vpack.c.bf16 %v447, %v447
        %v461 = vunpack.c.l.b16 %v251
        %v462 = vunpack.c.l.b16 %v252
        %v463 = vunpack.c.l.b16 %v253
        %v464 = vunpack.c.l.b16 %v254
        %v465 = vunpack.c.l.b16 %v255
        %v466 = vunpack.c.l.b16 %v256
        %v467 = vunpack.c.l.b16 %v257
        %v468 = vunpack.c.l.b16 %v258
        %v469 = vunpack.c.l.b16 %v259
        %v470 = vunpack.c.l.b16 %v260
        %v471 = vunpack.c.l.b16 %v261
        %v472 = vunpack.c.l.b16 %v262
        %v473 = vpack.c.b16 %v462, %v461
        %v474 = vpack.c.b16 %v464, %v463
        %v475 = vpack.c.b16 %v466, %v465
        %v476 = vpack.c.b16 %v468, %v467
        %v477 = vpack.c.b16 %v470, %v469
        %v478 = vpack.c.b16 %v472, %v471
        %v486 = vsel %vm407, %v448, 0
        %488 = vmatpush.bf16.msra.mxu0 0
        %489 = vmatpush.bf16.msra.mxu0 0
        %490 = vmatpush.bf16.msra.mxu0 %v478
        %491 = vmatpush.bf16.msra.mxu0 %v477
        %492 = vmatpush.bf16.msra.mxu0 %v476
        %493 = vmatpush.bf16.msra.mxu0 %v475
        %494 = vmatpush.bf16.msra.mxu0 %v474
        %495 = vmatpush.bf16.msra.mxu0 %v473
        %496 = vmatmul.bf16.gmra.mxu0 %v486
        %v497 = vpop.f32.mrf.mxu0
        %v498 = vadd.f32 0.0, %v497
        %v499 = vpop.f32.mrf.mxu0
        %500 = vdwg.mxu0
        %v502 = vsel %vm407, %v445, 0
        %504 = vmatpush.bf16.msra.mxu0 0
        %505 = vmatpush.bf16.msra.mxu0 0
        %506 = vmatpush.bf16.msra.mxu0 %v478
        %507 = vmatpush.bf16.msra.mxu0 %v477
        %508 = vmatpush.bf16.msra.mxu0 %v476
        %509 = vmatpush.bf16.msra.mxu0 %v475
        %510 = vmatpush.bf16.msra.mxu0 %v474
        %511 = vmatpush.bf16.msra.mxu0 %v473
        %512 = vmatmul.bf16.gmra.mxu0 %v502
        %v513 = vpop.f32.mrf.mxu0
        %v514 = vadd.f32 %v498, %v513
        %v515 = vpop.f32.mrf.mxu0
        %516 = vdwg.mxu0
        %v517 = vmul.f32 %v514, 0.03125
        %v518 = vmul.f32 %v444, %v444
        %v519 = vpack.c.bf16 %v518, %v518
        %v520 = vunpack.c.l.bf16 %v519
        %v521 = vsub.f32 %v518, %v520
        %v522 = vpack.c.bf16 %v521, %v521
        %v524 = vsel %vm407, %v522, 0
        %526 = vmatpush.bf16.msra.mxu0 0
        %527 = vmatpush.bf16.msra.mxu0 0
        %528 = vmatpush.bf16.msra.mxu0 %v478
        %529 = vmatpush.bf16.msra.mxu0 %v477
        %530 = vmatpush.bf16.msra.mxu0 %v476
        %531 = vmatpush.bf16.msra.mxu0 %v475
        %532 = vmatpush.bf16.msra.mxu0 %v474
        %533 = vmatpush.bf16.msra.mxu0 %v473
        %534 = vmatmul.bf16.gmra.mxu0 %v524
        %v535 = vpop.f32.mrf.mxu0
        %v536 = vadd.f32 0.0, %v535
        %v537 = vpop.f32.mrf.mxu0
        %538 = vdwg.mxu0
        %v540 = vsel %vm407, %v519, 0
        %542 = vmatpush.bf16.msra.mxu0 0
        %543 = vmatpush.bf16.msra.mxu0 0
        %544 = vmatpush.bf16.msra.mxu0 %v478
        %545 = vmatpush.bf16.msra.mxu0 %v477
        %546 = vmatpush.bf16.msra.mxu0 %v476
        %547 = vmatpush.bf16.msra.mxu0 %v475
        %548 = vmatpush.bf16.msra.mxu0 %v474
        %549 = vmatpush.bf16.msra.mxu0 %v473
        %550 = vmatmul.bf16.gmra.mxu0 %v540
        %v551 = vpop.f32.mrf.mxu0
        %v552 = vadd.f32 %v536, %v551
        %v553 = vpop.f32.mrf.mxu0
        %554 = vdwg.mxu0
        %v555 = vmul.f32 %v552, 0.03125
        %v556 = vmul.f32 %v517, %v517
        %v557 = vsub.f32 %v555, %v556
        %v558 = vsub.f32 %v444, %v517
        %v559 = vadd.f32 %v557, 1e-05
        %v560 = vrsqrt.pop %v559
        %v561 = vmul.f32 %v560, %v559
        %v562 = vmul.f32 %v561, %v560
        %v563 = vmul.f32 0.5, %v562
        %v564 = vsub.f32 1.5, %v563
        %v565 = vmul.f32 %v560, %v564
        %vm566 = vweird.f32 %v559
        %vm567 = vweird.f32 %v560
        %vm568 = vmor %vm566, %vm567
        %v569 = vsel %vm568, %v560, %v565
        %v570 = vmul.f32 %v558, %v569
        %v571 = vperm.slane %v277, 3
        %v572 = vmul.f32 %v570, %v571
        %v573 = vperm.slane %v277, 4
        %v574 = vadd.f32 %v572, %v573
        %v575 = vpack.c.bf16 %v574, %v574
        %v588 = vunpack.c.l.b16 %v235
        %v589 = vunpack.c.h.b16 %v235
        %v590 = vunpack.c.l.b16 %v236
        %v591 = vunpack.c.h.b16 %v236
        %v592 = vunpack.c.l.b16 %v237
        %v593 = vunpack.c.h.b16 %v237
        %v594 = vunpack.c.l.b16 %v238
        %v595 = vunpack.c.h.b16 %v238
        %v596 = vunpack.c.l.b16 %v239
        %v597 = vunpack.c.h.b16 %v239
        %v598 = vunpack.c.l.b16 %v240
        %v599 = vunpack.c.h.b16 %v240
        %v600 = vunpack.c.l.b16 %v241
        %v601 = vunpack.c.h.b16 %v241
        %v602 = vunpack.c.l.b16 %v242
        %v603 = vunpack.c.h.b16 %v242
        %v604 = vunpack.c.l.b16 %v243
        %v605 = vunpack.c.h.b16 %v243
        %v606 = vunpack.c.l.b16 %v244
        %v607 = vunpack.c.h.b16 %v244
        %v608 = vunpack.c.l.b16 %v245
        %v609 = vunpack.c.h.b16 %v245
        %v610 = vunpack.c.l.b16 %v246
        %v611 = vunpack.c.h.b16 %v246
        %v612 = vpack.c.b16 %v590, %v588
        %v613 = vpack.c.b16 %v591, %v589
        %v614 = vpack.c.b16 %v594, %v592
        %v615 = vpack.c.b16 %v595, %v593
        %v616 = vpack.c.b16 %v598, %v596
        %v617 = vpack.c.b16 %v599, %v597
        %v618 = vpack.c.b16 %v602, %v600
        %v619 = vpack.c.b16 %v603, %v601
        %v620 = vpack.c.b16 %v606, %v604
        %v621 = vpack.c.b16 %v607, %v605
        %v622 = vpack.c.b16 %v610, %v608
        %v623 = vpack.c.b16 %v611, %v609
        %v637 = vsel %vm407, %v575, 0
        %639 = vmatpush.bf16.msra.mxu0 0
        %640 = vmatpush.bf16.msra.mxu0 0
        %641 = vmatpush.bf16.msra.mxu0 %v622
        %642 = vmatpush.bf16.msra.mxu0 %v620
        %643 = vmatpush.bf16.msra.mxu0 %v618
        %644 = vmatpush.bf16.msra.mxu0 %v616
        %645 = vmatpush.bf16.msra.mxu0 %v614
        %646 = vmatpush.bf16.msra.mxu0 %v612
        %647 = vmatmul.bf16.gmra.mxu0 %v637
        %v648 = vpop.f32.mrf.mxu0
        %v649 = vadd.f32 0.0, %v648
        %v650 = vpop.f32.mrf.mxu0
        %651 = vdwg.mxu0
        %652 = vmatpush.bf16.msra.mxu0 0
        %653 = vmatpush.bf16.msra.mxu0 0
        %654 = vmatpush.bf16.msra.mxu0 %v623
        %655 = vmatpush.bf16.msra.mxu0 %v621
        %656 = vmatpush.bf16.msra.mxu0 %v619
        %657 = vmatpush.bf16.msra.mxu0 %v617
        %658 = vmatpush.bf16.msra.mxu0 %v615
        %659 = vmatpush.bf16.msra.mxu0 %v613
        %660 = vmatmul.bf16.gmra.mxu0 %v637
        %v661 = vpop.f32.mrf.mxu0
        %v662 = vadd.f32 0.0, %v661
        %v663 = vpop.f32.mrf.mxu0
        %664 = vdwg.mxu0
        %v665 = vperm.slane %v277, 5
        %v666 = vadd.f32 %v649, %v665
        %v667 = vmul.f32 %v666, 0.5
        %v668 = vmul.f32 %v666, 0.70710677
        %v669 = vmul.f32 %v668, %v668
        %v670 = vmin.f32 16.0, %v669
        %v671 = vmul.f32 %v670, 2.1237322e-06
        %v672 = vadd.f32 %v671, 0.00028619796
        %v673 = vmul.f32 %v670, %v672
        %v674 = vadd.f32 %v673, 0.0036580483
        %v675 = vmul.f32 %v670, %v674
        %v676 = vadd.f32 %v675, 0.05243302
        %v677 = vmul.f32 %v670, %v676
        %v678 = vadd.f32 %v677, 0.18741608
        %v679 = vmul.f32 %v670, %v678
        %v680 = vadd.f32 %v679, 1.1283791
        %v681 = vmul.f32 %v668, %v680
        %v682 = vmul.f32 %v670, 3.8918573e-05
        %v683 = vadd.f32 %v682, 0.001143296
        %v684 = vmul.f32 %v670, %v683
        %v685 = vadd.f32 %v684, 0.014752088
        %v686 = vmul.f32 %v670, %v685
        %v687 = vadd.f32 %v686, 0.112945676
        %v688 = vmul.f32 %v670, %v687
        %v689 = vadd.f32 %v688, 0.4994258
        %v690 = vmul.f32 %v670, %v689
        %v691 = vadd.f32 %v690, 1.0
        %v692 = vrcp.pop %v691
        %v693 = vmul.f32 %v691, %v692
        %v694 = vsub.f32 1.0, %v693
        %v695 = vmul.f32 %v692, %v694
        %v696 = vadd.f32 %v692, %v695
        %vm697 = vweird.f32 %v691
        %vm698 = vweird.f32 %v692
        %vm699 = vmor %vm697, %vm698
        %v700 = vsel %vm699, %v692, %v696
        %v701 = vand.u32 2147483647, %v691
        %vm702 = vcmp.eq.f32.partialorder %v701, 8.507059e+37
        %v703 = vand.u32 %v691, 2147483648
        %v704 = vor.u32 1.1754944e-38, %v703
        %v705 = vsel %vm702, %v704, %v700
        %v706 = vmul.f32 %v681, %v705
        %v707 = vmin.f32 %v706, 1.0
        %v708 = vmax.f32 %v707, -1.0
        %v709 = vadd.f32 %v708, 1.0
        %v710 = vmul.f32 %v667, %v709
        %v711 = vperm.slane %v277, 7
        %v712 = vadd.f32 %v662, %v711
        %v713 = vpack.c.bf16 %v710, %v710
        %v714 = vperm.slane %v277, 6
        %v719 = vunpack.c.l.b16 %v247
        %v720 = vunpack.c.l.b16 %v248
        %v721 = vunpack.c.l.b16 %v249
        %v722 = vunpack.c.l.b16 %v250
        %v723 = vpack.c.b16 %v720, %v719
        %v724 = vpack.c.b16 %v722, %v721
        %vm727 = vcmask 261120
        %v729 = vsel %vm727, %v713, 0
        %731 = vmatpush.bf16.msra.mxu0 0
        %732 = vmatpush.bf16.msra.mxu0 0
        %733 = vmatpush.bf16.msra.mxu0 0
        %734 = vmatpush.bf16.msra.mxu0 0
        %735 = vmatpush.bf16.msra.mxu0 0
        %736 = vmatpush.bf16.msra.mxu0 0
        %737 = vmatpush.bf16.msra.mxu0 %v724
        %738 = vmatpush.bf16.msra.mxu0 %v723
        %739 = vmatmul.bf16.gmra.mxu0 %v729
        %v740 = vpop.f32.mrf.mxu0
        %v741 = vadd.f32 %v714, %v740
        %v742 = vpop.f32.mrf.mxu0
        %743 = vdwg.mxu0
        %v744 = vxor.u32 %v741, 2147483648
        %v745 = vmul.f32 %v744, 1.442695
        %v746 = vpow.pop %v745
        %v747 = vadd.f32 %v746, 1.0
        %v748 = vrcp.pop %v747
        %v749 = vmul.f32 %v747, %v748
        %v750 = vsub.f32 1.0, %v749
        %v751 = vmul.f32 %v748, %v750
        %v752 = vadd.f32 %v748, %v751
        %vm753 = vweird.f32 %v747
        %vm754 = vweird.f32 %v748
        %vm755 = vmor %vm753, %vm754
        %v756 = vsel %vm755, %v748, %v752
        %v757 = vand.u32 2147483647, %v747
        %vm758 = vcmp.eq.f32.partialorder %v757, 8.507059e+37
        %v759 = vand.u32 %v747, 2147483648
        %v760 = vor.u32 1.1754944e-38, %v759
        %v761 = vsel %vm758, %v760, %v756
        %v762 = vmul.f32 1.0, %v761
        %v763 = vmul.f32 %v741, %v762
        %v764 = vadd.f32 %v763, %v712
        %vm765 = vcmask 23552
        %v766 = vsel %vm765, %v764, 0.0
        %767 = vadd.xlane.f32.xlu0 %v766
        %v768 = vpop.xlane.xlu0 %767
        %v769 = vrcp.pop 3.0
        %v770 = vmul.f32 3.0, %v769
        %v771 = vsub.f32 1.0, %v770
        %v772 = vmul.f32 %v769, %v771
        %v773 = vadd.f32 %v769, %v772
        %vm774 = vweird.f32 %v769
        %v775 = vsel %vm774, %v769, %v773
        %v776 = vmul.f32 %v768, %v775
        %v777 = vmul.f32 %v764, %v764
        %v778 = vsel %vm765, %v777, 0.0
        %779 = vadd.xlane.f32.xlu0 %v778
        %v780 = vpop.xlane.xlu0 %779
        %v781 = vmul.f32 %v780, %v775
        %v782 = vmul.f32 %v776, %v776
        %v783 = vsub.f32 %v781, %v782
        %v784 = vsub.f32 %v764, %v776
        %v785 = vadd.f32 %v783, 1e-05
        %v786 = vrsqrt.pop %v785
        %v787 = vmul.f32 %v786, %v785
        %v788 = vmul.f32 %v787, %v786
        %v789 = vmul.f32 0.5, %v788
        %v790 = vsub.f32 1.5, %v789
        %v791 = vmul.f32 %v786, %v790
        %vm792 = vweird.f32 %v785
        %vm793 = vweird.f32 %v786
        %vm794 = vmor %vm792, %vm793
        %v795 = vsel %vm794, %v786, %v791
        %v796 = vmul.f32 %v784, %v795
        %v797 = vperm.slane %v278, 0
        %v798 = vmul.f32 %v796, %v797
        %v799 = vperm.slane %v278, 1
        %v800 = vadd.f32 %v798, %v799
        %v801 = vsel %vm765, %v800, -inf
        %802 = vmax.xlane.f32.xlu0 %v801
        %v803 = vpop.xlane.xlu0 %802
        %v804 = vsub.f32 %v800, %v803
        %v805 = vmul.f32 %v804, 1.442695
        %v806 = vpow.pop %v805
        %v807 = vsel %vm765, %v806, 0.0
        %808 = vadd.xlane.f32.xlu0 %v807
        %v809 = vpop.xlane.xlu0 %808
        %v810 = vrcp.pop %v809
        %v811 = vmul.f32 %v809, %v810
        %v812 = vsub.f32 2.0, %v811
        %v813 = vmul.f32 %v810, %v812
        %v814 = vmul.f32 %v806, %v813
        %v815 = vsel %vm765, %v814, 0.0
        %v816 = vpack.c.bf16 %v815, %v815
        %v817 = vunpack.c.l.bf16 %v816
        %v818 = vsub.f32 %v815, %v817
        %v819 = vpack.c.bf16 %v818, %v818
        %v822 = vunpack.c.l.b16 %v275
        %v823 = vunpack.c.l.b16 %v276
        %v824 = vpack.c.b16 %v823, %v822
        %v827 = vsel %vm291, %v819, 0
        %829 = vmatpush.bf16.msra.mxu0 0
        %830 = vmatpush.bf16.msra.mxu0 0
        %831 = vmatpush.bf16.msra.mxu0 0
        %832 = vmatpush.bf16.msra.mxu0 0
        %833 = vmatpush.bf16.msra.mxu0 0
        %834 = vmatpush.bf16.msra.mxu0 0
        %835 = vmatpush.bf16.msra.mxu0 0
        %836 = vmatpush.bf16.msra.mxu0 %v824
        %837 = vmatmul.bf16.gmra.mxu0 %v827
        %v838 = vpop.f32.mrf.mxu0
        %v839 = vadd.f32 0.0, %v838
        %v840 = vpop.f32.mrf.mxu0
        %841 = vdwg.mxu0
        %v843 = vsel %vm291, %v816, 0
        %845 = vmatpush.bf16.msra.mxu0 0
        %846 = vmatpush.bf16.msra.mxu0 0
        %847 = vmatpush.bf16.msra.mxu0 0
        %848 = vmatpush.bf16.msra.mxu0 0
        %849 = vmatpush.bf16.msra.mxu0 0
        %850 = vmatpush.bf16.msra.mxu0 0
        %851 = vmatpush.bf16.msra.mxu0 0
        %852 = vmatpush.bf16.msra.mxu0 %v824
        %853 = vmatmul.bf16.gmra.mxu0 %v843
        %v854 = vpop.f32.mrf.mxu0
        %v855 = vadd.f32 %v839, %v854
        %v856 = vpop.f32.mrf.mxu0
        %857 = vdwg.mxu0
        %v858 = vmul.f32 %v574, %v855
        %v859 = vpack.c.bf16 %v858, %v858
        %v860 = vunpack.c.l.bf16 %v859
        %v861 = vsub.f32 %v858, %v860
        %v862 = vpack.c.bf16 %v861, %v861
        %v875 = vunpack.c.l.b16 %v263
        %v876 = vunpack.c.l.b16 %v264
        %v877 = vunpack.c.l.b16 %v265
        %v878 = vunpack.c.l.b16 %v266
        %v879 = vunpack.c.l.b16 %v267
        %v880 = vunpack.c.l.b16 %v268
        %v881 = vunpack.c.l.b16 %v269
        %v882 = vunpack.c.l.b16 %v270
        %v883 = vunpack.c.l.b16 %v271
        %v884 = vunpack.c.l.b16 %v272
        %v885 = vunpack.c.l.b16 %v273
        %v886 = vunpack.c.l.b16 %v274
        %v887 = vpack.c.b16 %v876, %v875
        %v888 = vpack.c.b16 %v878, %v877
        %v889 = vpack.c.b16 %v880, %v879
        %v890 = vpack.c.b16 %v882, %v881
        %v891 = vpack.c.b16 %v884, %v883
        %v892 = vpack.c.b16 %v886, %v885
        %v900 = vsel %vm407, %v862, 0
        %902 = vmatpush.bf16.msra.mxu0 0
        %903 = vmatpush.bf16.msra.mxu0 0
        %904 = vmatpush.bf16.msra.mxu0 %v892
        %905 = vmatpush.bf16.msra.mxu0 %v891
        %906 = vmatpush.bf16.msra.mxu0 %v890
        %907 = vmatpush.bf16.msra.mxu0 %v889
        %908 = vmatpush.bf16.msra.mxu0 %v888
        %909 = vmatpush.bf16.msra.mxu0 %v887
        %910 = vmatmul.bf16.gmra.mxu0 %v900
        %v911 = vpop.f32.mrf.mxu0
        %v912 = vadd.f32 0.0, %v911
        %v913 = vpop.f32.mrf.mxu0
        %914 = vdwg.mxu0
        %v916 = vsel %vm407, %v859, 0
        %918 = vmatpush.bf16.msra.mxu0 0
        %919 = vmatpush.bf16.msra.mxu0 0
        %920 = vmatpush.bf16.msra.mxu0 %v892
        %921 = vmatpush.bf16.msra.mxu0 %v891
        %922 = vmatpush.bf16.msra.mxu0 %v890
        %923 = vmatpush.bf16.msra.mxu0 %v889
        %924 = vmatpush.bf16.msra.mxu0 %v888
        %925 = vmatpush.bf16.msra.mxu0 %v887
        %926 = vmatmul.bf16.gmra.mxu0 %v916
        %v927 = vpop.f32.mrf.mxu0
        %v928 = vadd.f32 %v912, %v927
        %v929 = vpop.f32.mrf.mxu0
        %930 = vdwg.mxu0
        %932 = vrot.lane.b32.xlu0 %v814, 32
        %v933 = vpop.permute.xlu0 %932
        %v935 = vsel %vm727, %v928, %v933
        %vm936 = vcmask 285696
        %v937 = vsel %vm936, %v935, 0.0
        %vm938 = vcmask 523264
        %939 = vst.msk [vmem:[%s215] sm:$0xff] %vm938, %v937
        %s940 = sand.u32 %s137, 1
        %s941 = scalar_lea.sflag [#allocation3], %s940
        %s942 = sand.u32 %s137, 1
        %s943 = smul.addr %s942, 8
        %s944 = scalar_lea.vmem [#allocation2], %s943
        // Predicated region
        $region41: #{tpu_custom_call.1} parent=39 // pred_check
          %p945 = pneg %p147
        $region42: #{tpu_custom_call.1} parent=39 // pred_check_branch
          %947 = sbr.rel (%p945) target = $region44
        $region43: #{tpu_custom_call.1} parent=39 // pred_region
          %949 = vsyncadd %s941, 0
          %s950 = smul.addr %s19, 8
          %s951 = scalar_lea.hbm %s5, %s950
          %s953 = sshll.u32 %s944, 4
          %s954 = int_to_ptr.vmem [resolvable:$true] %s953
          %s955 = sshll.u32 %s951, 4
          %s956 = int_to_ptr.hbm [resolvable:$true] %s955
          %958 = dma.vmem_to_hbm [thread:$0]  %s954, 128, %s956, %s941
        $region44: #{tpu_custom_call.1} parent=39 // pred_fallthru
          _
      $region40: #{tpu_custom_call.1} parent=5 // pred_fallthru
        _
      %p959 = scmp.le.s32.totalorder 2, %s14
      // Predicated region
      $region45: #{tpu_custom_call.1} parent=5 // pred_check
        %p960 = pneg %p959
      $region46: #{tpu_custom_call.1} parent=5 // pred_check_branch
        %962 = sbr.rel (%p960) target = $region48
      $region47: #{tpu_custom_call.1} parent=5 // pred_region
        %s963 = ssub.s32 %s14, 2
        // Predicated region
        $region49: #{tpu_custom_call.1} parent=47 // pred_check
          %p964 = pneg %p153
        $region50: #{tpu_custom_call.1} parent=47 // pred_check_branch
          %966 = sbr.rel (%p964) target = $region52
        $region51: #{tpu_custom_call.1} parent=47 // pred_region
          %s967 = sand.u32 %s138, 1
          %s968 = scalar_lea.sflag [#allocation3], %s967
          %s969 = sand.u32 %s138, 1
          %s970 = smul.addr %s969, 8
          %s971 = scalar_lea.vmem [#allocation2], %s970
          %973 = dma.done %s968, 128
        $region52: #{tpu_custom_call.1} parent=47 // pred_fallthru
          _
      $region48: #{tpu_custom_call.1} parent=5 // pred_fallthru
        _
    $region6: #{tpu_custom_call.1} parent=1 // loop_footer
      %s18 = sadd.s32 1, %s14
    $region7: #{tpu_custom_call.1} parent=1 // loop_footer_branch
      %13 = sbr.rel target = $region3
    $region8: #{tpu_custom_call.1} parent=1 // loop_exit
      _
    %974 = vsyncpa [#allocation3], 1
    %s975 = scalar_lea.sflag [#allocation3], 1
    %976 = vsyncpa %s975, 1

</llo_original>
